<compile_context>
chip_gen: v6e
topology: v6e:2x2x1
jax: 0.10.0
libtpu: 0.0.40
codegen_flags: <defaults>
</compile_context>

<pallas_src>
import jax
import jax.numpy as jnp
from jax.experimental import pallas as pl
from jax.experimental.pallas import tpu as pltpu


def _round_up(n, m):
    return ((n + m - 1) // m) * m


def _cdiv(a, b):
    return (a + b - 1) // b


def _device_kind():
    try:
        return getattr(jax.devices()[0], "device_kind", "").lower()
    except Exception:
        return ""


def _pick_fold(embed_dim, lanes=None):
    """How many logical rows to fold into the lane dimension."""
    if lanes is None:
        kind = _device_kind()
        # 256-wide MXU / lane blocks on v6e & v7x; 128 elsewhere (and fallback).
        lanes = 256 if ("v6" in kind or "v7" in kind) else 128
    for width in (lanes, 128):
        if width % embed_dim == 0:
            return width // embed_dim
    return 1  # embed_dim is already large; output is lane-dense enough as-is


def _default_min_grid_steps():
    # v7x has 2 TensorCores per chip; keep >=2 parallel grid steps when possible.
    return 2 if "v7" in _device_kind() else 1


def _proj_kernel(x_ref, w_ref, b_ref, o_ref):
    """Row-folded joint projection (+ CLS) as a single MXU matmul.

    x_ref: (TR, fold*(D+1))      `fold` logical keypoint/CLS rows per folded row
    w_ref: (fold*(D+1), fold*E)  block-diagonal weight (VMEM resident)
    b_ref: (1, fold*E)           bias tiled per lane group (VMEM resident)
    o_ref: (TR, fold*E)          lane-dense output: one full-width store
    """
    acc = jnp.dot(x_ref[...], w_ref[...], preferred_element_type=jnp.float32)
    o_ref[...] = (acc + b_ref[...]).astype(o_ref.dtype)


def prepare_params(weight, bias, cls_token, *, lanes=None):
    """Pre-format parameters once (not per forward call).

    weight: (E, D) as in nn.Linear; bias: (E,); cls_token: (E,) or (1, 1, E).

    Builds the block-diagonal weight for the row-folded, CLS-fused projection:
        w_aug = [[W^T], [cls - bias]]               (D+1, E)
        w_big[g*(D+1)+k, g*E+e] = w_aug[k, e]       (fold*(D+1), fold*E)
        b_big[0, g*E+e]         = bias[e]           (1, fold*E)
    so that  out_row = [x, is_cls] @ w_aug + bias  is the projection for joint
    rows (is_cls = 0) and exactly `cls` for CLS rows (is_cls = 1, x = 0).
    """
    weight = jnp.asarray(weight, jnp.float32)
    E, D = weight.shape
    bias = jnp.asarray(bias, jnp.float32).reshape(E)
    cls = jnp.asarray(cls_token, jnp.float32).reshape(E)

    fold = _pick_fold(E, lanes)
    w_aug = jnp.concatenate([weight.T, (cls - bias).reshape(1, E)], axis=0)  # (D+1, E)
    w_big = jnp.kron(jnp.eye(fold, dtype=jnp.float32), w_aug)   # (fold*(D+1), fold*E)
    b_big = jnp.tile(bias, (fold,)).reshape(1, fold * E)        # (1, fold*E)
    return {"w_big": w_big, "b_big": b_big}


def keypoint_patch_embedding(x, params, *, max_folded_rows_per_step=512,
                             min_grid_steps=None, out_dtype=jnp.float32):
    """x: (B, J, D) keypoints. Returns (B, J+1, E) with CLS at position 0."""
    B, J, D = x.shape
    K0 = D + 1                                    # keypoint dims + CLS indicator
    w_big, b_big = params["w_big"], params["b_big"]
    fold = w_big.shape[0] // K0                   # rows folded into the lane dim
    E = w_big.shape[1] // fold
    assert w_big.shape == (fold * K0, fold * E), (w_big.shape, fold, K0, E)
    assert b_big.shape == (1, fold * E), b_big.shape

    # ---- CLS-augmented, flattened input: (B*(J+1), D+1) ---------------------
    x32 = x.astype(jnp.float32)
    joint_rows = jnp.concatenate(
        [x32, jnp.zeros((B, J, 1), jnp.float32)], axis=-1)              # (B, J, D+1)
    cls_row = jnp.zeros((K0,), jnp.float32).at[K0 - 1].set(1.0)
    cls_rows = jnp.broadcast_to(cls_row.reshape(1, 1, K0), (B, 1, K0))
    x_aug = jnp.concatenate([cls_rows, joint_rows], axis=1)             # (B, J+1, D+1)

    n_rows = B * (J + 1)
    x_flat = x_aug.reshape(n_rows, K0)

    # ---- Row folding + minimal padding + grid split --------------------------
    if min_grid_steps is None:
        min_grid_steps = _default_min_grid_steps()

    r_rows = _cdiv(n_rows, fold)                  # folded rows actually needed
    r_pad = _round_up(r_rows, 8)                  # sublane alignment only
    steps = max(1, _cdiv(r_pad, max_folded_rows_per_step))
    if min_grid_steps > 1 and r_pad >= 8 * min_grid_steps:
        steps = max(steps, min_grid_steps)        # use both TCs on v7x
    tr = _round_up(_cdiv(r_pad, steps), 8)        # folded rows per grid step
    r_pad = tr * steps
    n_pad = r_pad * fold

    if n_pad != n_rows:
        x_flat = jnp.pad(x_flat, ((0, n_pad - n_rows), (0, 0)))
    x_fold = x_flat.reshape(r_pad, fold * K0)     # free: bit-identical layout

    # ---- One lane-dense MXU matmul per row tile ------------------------------
    out_fold = pl.pallas_call(
        _proj_kernel,
        out_shape=jax.ShapeDtypeStruct((r_pad, fold * E), out_dtype),
        grid_spec=pltpu.PrefetchScalarGridSpec(
            num_scalar_prefetch=0,
            grid=(steps,),
            in_specs=[
                pl.BlockSpec((tr, fold * K0), lambda r: (r, 0)),
                pl.BlockSpec((fold * K0, fold * E), lambda r: (0, 0)),  # resident
                pl.BlockSpec((1, fold * E), lambda r: (0, 0)),          # resident
            ],
            out_specs=pl.BlockSpec((tr, fold * E), lambda r: (r, 0)),
        ),
        compiler_params=pltpu.CompilerParams(
            dimension_semantics=("parallel",)),
    )(x_fold, w_big, b_big)

    # Un-fold: bit-identical row-major view; slice only if padding was needed.
    out = out_fold.reshape(n_pad, E)
    if n_pad != n_rows:
        out = out[:n_rows]
    out = out.reshape(B, J + 1, E)
    # TODO(synk): training-mode dropout (pltpu.prng_* + mask) intentionally omitted;
    # nn.Dropout is identity at inference.
    return out


def _reference(x, weight, bias, cls_token):
    proj = jnp.einsum("bjd,ed->bje", x, weight,
                      precision=jax.lax.Precision.HIGHEST) + bias
    cls = jnp.broadcast_to(cls_token.reshape(1, 1, -1),
                           (x.shape[0], 1, cls_token.shape[-1]))
    return jnp.concatenate([cls, proj], axis=1)


if __name__ == "__main__":
    # Small, deterministic problem: batch=2, num_joints=16, input_dim=3, embed_dim=32.
    B, J, D, E = 2, 16, 3, 32

    key = jax.random.PRNGKey(0)
    kx, kw, kb, kc = jax.random.split(key, 4)

    # Test values are rounded to bf16-representable floats so the correctness
    # check is insensitive to the MXU's f32 contraction mode (bf16 multi-pass
    # vs full fp32) while keeping a tight tolerance.
    def bf16_exact(a):
        return a.astype(jnp.bfloat16).astype(jnp.float32)

    x = bf16_exact(jax.random.normal(kx, (B, J, D), dtype=jnp.float32))

    # nn.Linear(input_dim, embed_dim): weight (E, D) ~ U(-1/sqrt(D), 1/sqrt(D)), bias (E,)
    bound = 1.0 / jnp.sqrt(jnp.float32(D))
    weight = bf16_exact(jax.random.uniform(kw, (E, D), jnp.float32, -bound, bound))
    bias = bf16_exact(jax.random.uniform(kb, (E,), jnp.float32, -bound, bound))
    # cls_token ~ randn(1, 1, E) -> stored flat as (E,); built as bias + exact delta
    # so the fused (cls - bias) weight row is also exactly representable.
    cls_token = bias + bf16_exact(jax.random.normal(kc, (E,), dtype=jnp.float32))

    params = prepare_params(weight, bias, cls_token)   # formatted once
    fwd = jax.jit(keypoint_patch_embedding)

    out = jax.block_until_ready(fwd(x, params))

    ref = _reference(x, weight, bias, cls_token)
    assert out.shape == (B, J + 1, E), out.shape
    max_err = float(jnp.max(jnp.abs(out - ref)))
    assert jnp.allclose(out, ref, atol=1e-5, rtol=1e-5), f"mismatch vs reference: {max_err}"

    print("KERNEL_OK")
</pallas_src>

<mosaic_0001>
module attributes {stable_mosaic.version = 11 : i64} {
  func.func @_proj_kernel(%arg0: i32, %arg1: memref<16x16xf32, #tpu.memory_space<vmem>>, %arg2: memref<16x128xf32, #tpu.memory_space<vmem>>, %arg3: memref<1x128xf32, #tpu.memory_space<vmem>>, %arg4: memref<16x128xf32, #tpu.memory_space<vmem>>) attributes {dimension_semantics = [#tpu.dimension_semantics<parallel>], iteration_bounds = array<i64: 1>, scalar_prefetch = 0 : i64, scratch_operands = 0 : i64, tpu.core_type = #tpu.core_type<tc>, window_params = [{transform_indices = @transform_0, window_bounds = array<i64: 16, 16>}, {pipeline_mode = #tpu.pipeline_mode<synchronous>, transform_indices = @transform_1, window_bounds = array<i64: 16, 128>}, {pipeline_mode = #tpu.pipeline_mode<synchronous>, transform_indices = @transform_2, window_bounds = array<i64: 1, 128>}, {transform_indices = @transform_3, window_bounds = array<i64: 16, 128>}]} {
    %c0 = arith.constant 0 : index
    %c0_0 = arith.constant 0 : index
    %0 = vector.load %arg1[%c0, %c0_0] : memref<16x16xf32, #tpu.memory_space<vmem>>, vector<16x16xf32>
    %c0_1 = arith.constant 0 : index
    %c0_2 = arith.constant 0 : index
    %1 = vector.load %arg2[%c0_1, %c0_2] : memref<16x128xf32, #tpu.memory_space<vmem>>, vector<16x128xf32>
    %cst = arith.constant dense<0.000000e+00> : vector<16x128xf32>
    %2 = tpu.matmul %0, %1, %cst {dimension_numbers = #tpu.dot_dimension_numbers<[1], [0], [0], [1], [0, 0, 1, 1], [], []>} : vector<16x16xf32>, vector<16x128xf32>, vector<16x128xf32> -> vector<16x128xf32>
    %c0_3 = arith.constant 0 : index
    %c0_4 = arith.constant 0 : index
    %3 = vector.load %arg3[%c0_3, %c0_4] : memref<1x128xf32, #tpu.memory_space<vmem>>, vector<1x128xf32>
    %4 = vector.broadcast %3 : vector<1x128xf32> to vector<16x128xf32>
    %5 = arith.addf %2, %4 : vector<16x128xf32>
    %c0_5 = arith.constant 0 : index
    %c0_6 = arith.constant 0 : index
    %6 = vector.load %arg4[%c0_5, %c0_6] : memref<16x128xf32, #tpu.memory_space<vmem>>, vector<16x128xf32>
    tpu.vector_store %arg4[%c0_5, %c0_6], %5 {strides = array<i32>} : memref<16x128xf32, #tpu.memory_space<vmem>>, vector<16x128xf32>,
    return
  }
  func.func @transform_0(%arg0: i32) -> (i32, i32) {
    %c0_i32 = arith.constant 0 : i32
    %c0_i32_0 = arith.constant 0 : i32
    return %arg0, %c0_i32 : i32, i32
  }
  func.func @transform_1(%arg0: i32) -> (i32, i32) {
    %c0_i32 = arith.constant 0 : i32
    %c0_i32_0 = arith.constant 0 : i32
    %c0_i32_1 = arith.constant 0 : i32
    return %c0_i32, %c0_i32_0 : i32, i32
  }
  func.func @transform_2(%arg0: i32) -> (i32, i32) {
    %c0_i32 = arith.constant 0 : i32
    %c0_i32_0 = arith.constant 0 : i32
    %c0_i32_1 = arith.constant 0 : i32
    return %c0_i32, %c0_i32_0 : i32, i32
  }
  func.func @transform_3(%arg0: i32) -> (i32, i32) {
    %c0_i32 = arith.constant 0 : i32
    %c0_i32_0 = arith.constant 0 : i32
    return %arg0, %c0_i32 : i32, i32
  }
}

</mosaic_0001>

<llo_original>
// kernel: keypoint_patch_embedding.1
$region0: #{keypoint_patch_embedding.1}
  #allocation0 [shape = 'u32[]', space=smem, size = 0x4, offset = 0x4, fixed_abs, tag = 'smem constant byte address 0x4 - core index']
  #allocation1 [shape = 'u32[144,128]{1,0:T(1,128)}', space=vmem, size = 0x12000, scoped, tag = 'internal scratch']
  %s0 = inlined_call_operand.vmem [shape: f32[16,16], index: 0, kind: input, shape index: {}]
  %s1 = inlined_call_operand.vmem [shape: f32[16,128], index: 1, kind: input, shape index: {}]
  %s2 = inlined_call_operand.vmem [shape: f32[1,128], index: 2, kind: input, shape index: {}]
  %s3 = inlined_call_operand.vmem [shape: f32[16,128], index: 3, kind: output, shape index: {}]
  %s4 = sld [smem:[#allocation0]]
  $region22: #{keypoint_patch_embedding.1} parent=0
    _
  %s6 = ssub.s32 1, %s4
  %s7 = scalar_select 0, %s6, %s4
  // Predicated region
  $region2: #{keypoint_patch_embedding.1} parent=0 // pred_check
    _
  $region3: #{keypoint_patch_embedding.1} parent=0 // pred_check_branch
    %9 = sbr.rel (0) target = $region5
  $region4: #{keypoint_patch_embedding.1} parent=0 // pred_region
    _
  $region5: #{keypoint_patch_embedding.1} parent=0 // pred_fallthru
    _
  // Predicated region
  $region6: #{keypoint_patch_embedding.1} parent=0 // pred_check
    _
  $region7: #{keypoint_patch_embedding.1} parent=0 // pred_check_branch
    %11 = sbr.rel (0) target = $region9
  $region8: #{keypoint_patch_embedding.1} parent=0 // pred_region
    _
  $region9: #{keypoint_patch_embedding.1} parent=0 // pred_fallthru
    _
  // Predicated region
  $region10: #{keypoint_patch_embedding.1} parent=0 // pred_check
    _
  $region11: #{keypoint_patch_embedding.1} parent=0 // pred_check_branch
    %13 = sbr.rel (0) target = $region13
  $region12: #{keypoint_patch_embedding.1} parent=0 // pred_region
    _
  $region13: #{keypoint_patch_embedding.1} parent=0 // pred_fallthru
    _
  %v14 = vld [vmem:[%s0] sm:$0xff]
  %v15 = vld [vmem:[%s0 + $0x8] sm:$0xff]
  %v16 = vld [vmem:[%s1] sm:$0xff]
  %v17 = vld [vmem:[%s1 + $0x8] sm:$0xff]
  %v18 = vld [vmem:[%s2] sm:$0x1]
  %v20 = vlaneseq
  %v21 = vshrl.u32 %v20, 7
  %v22 = vsub.s32 0, %v21
  %v23 = vrot.slane %v18, %v22
  %vm25 = vcmask 130048
  %v27 = vsel %vm25, %v14, 0
  %v30 = vsel %vm25, %v15, 0
  %32 = vmatprep.subr.mxu0 0.0
  %33 = vmatpush1.msra.mxu0 0.0
  %34 = vmatprep.subr.mxu0 0.0
  %35 = vmatpush1.msra.mxu0 0.0
  %36 = vmatprep.subr.mxu0 0.0
  %37 = vmatpush1.msra.mxu0 0.0
  %38 = vmatprep.subr.mxu0 0.0
  %39 = vmatpush1.msra.mxu0 0.0
  %40 = vmatprep.subr.mxu0 0.0
  %41 = vmatpush1.msra.mxu0 0.0
  %42 = vmatprep.subr.mxu0 0.0
  %43 = vmatpush1.msra.mxu0 0.0
  %44 = vmatprep.subr.mxu0 0.0
  %45 = vmatpush1.msra.mxu0 0.0
  %46 = vmatprep.subr.mxu0 0.0
  %47 = vmatpush1.msra.mxu0 0.0
  %48 = vmatprep.subr.mxu0 0.0
  %49 = vmatpush1.msra.mxu0 0.0
  %50 = vmatprep.subr.mxu0 0.0
  %51 = vmatpush1.msra.mxu0 0.0
  %52 = vmatprep.subr.mxu0 0.0
  %53 = vmatpush1.msra.mxu0 0.0
  %54 = vmatprep.subr.mxu0 0.0
  %55 = vmatpush1.msra.mxu0 0.0
  %56 = vmatprep.subr.mxu0 0.0
  %57 = vmatpush1.msra.mxu0 0.0
  %58 = vmatprep.subr.mxu0 0.0
  %59 = vmatpush1.msra.mxu0 0.0
  %60 = vmatprep.subr.mxu0 0.0
  %61 = vmatpush1.msra.mxu0 %v17
  %62 = vmatprep.subr.mxu0 0.0
  %63 = vmatpush1.msra.mxu0 %v16
  %64 = vmatprep.subr.mxu0 0.0
  %65 = vmatpush2.msra.mxu0 0.0
  %66 = vmatprep.subr.mxu0 0.0
  %67 = vmatpush2.msra.mxu0 0.0
  %68 = vmatprep.subr.mxu0 0.0
  %69 = vmatpush2.msra.mxu0 0.0
  %70 = vmatprep.subr.mxu0 0.0
  %71 = vmatpush2.msra.mxu0 0.0
  %72 = vmatprep.subr.mxu0 0.0
  %73 = vmatpush2.msra.mxu0 0.0
  %74 = vmatprep.subr.mxu0 0.0
  %75 = vmatpush2.msra.mxu0 0.0
  %76 = vmatprep.subr.mxu0 0.0
  %77 = vmatpush2.msra.mxu0 0.0
  %78 = vmatprep.subr.mxu0 0.0
  %79 = vmatpush2.msra.mxu0 0.0
  %80 = vmatprep.subr.mxu0 0.0
  %81 = vmatpush2.msra.mxu0 0.0
  %82 = vmatprep.subr.mxu0 0.0
  %83 = vmatpush2.msra.mxu0 0.0
  %84 = vmatprep.subr.mxu0 0.0
  %85 = vmatpush2.msra.mxu0 0.0
  %86 = vmatprep.subr.mxu0 0.0
  %87 = vmatpush2.msra.mxu0 0.0
  %88 = vmatprep.subr.mxu0 0.0
  %89 = vmatpush2.msra.mxu0 0.0
  %90 = vmatprep.subr.mxu0 0.0
  %91 = vmatpush2.msra.mxu0 0.0
  %92 = vmatprep.subr.mxu0 0.0
  %93 = vmatpush2.msra.mxu0 0.0
  %94 = vmatprep.subr.mxu0 0.0
  %95 = vmatpush2.msra.mxu0 0.0
  %96 = vmatprep.mubr.f32.mxu0 0.0
  %97 = vmatmul.mubr.f32.gmra.mxu0 %v27
  %v98 = vpop.f32.mrf.mxu0
  %v99 = vadd.f32 %v23, %v98
  %v100 = vpop.f32.mrf.mxu0
  %101 = vmatprep.mubr.f32.mxu0 0.0
  %102 = vmatmul.mubr.f32.gmra.mxu0 %v30
  %v103 = vpop.f32.mrf.mxu0
  %v104 = vadd.f32 %v23, %v103
  %v105 = vpop.f32.mrf.mxu0
  %106 = vdwg.mxu0
  %107 = vst [vmem:[%s3] sm:$0xff] %v99
  %108 = vst [vmem:[%s3 + $0x8] sm:$0xff] %v104
  // Predicated region
  $region14: #{keypoint_patch_embedding.1} parent=0 // pred_check
    _
  $region15: #{keypoint_patch_embedding.1} parent=0 // pred_check_branch
    %110 = sbr.rel (0) target = $region17
  $region16: #{keypoint_patch_embedding.1} parent=0 // pred_region
    _
  $region17: #{keypoint_patch_embedding.1} parent=0 // pred_fallthru
    _
  // Predicated region
  $region18: #{keypoint_patch_embedding.1} parent=0 // pred_check
    _
  $region19: #{keypoint_patch_embedding.1} parent=0 // pred_check_branch
    %112 = sbr.rel (0) target = $region21
  $region20: #{keypoint_patch_embedding.1} parent=0 // pred_region
    _
  $region21: #{keypoint_patch_embedding.1} parent=0 // pred_fallthru
    _

</llo_original>
